<compile_context>
chip_gen: v5e
topology: v5e:2x2
jax: 0.10.0
libtpu: 0.0.40
codegen_flags: <defaults>
</compile_context>

<pallas_src>
import jax
import jax.numpy as jnp
from jax.experimental import pallas as pl
from jax.experimental.pallas import tpu as pltpu


def _bias_layer_kernel(lo_ref, hi_ref, alpha_ref, beta_ref, x_ref, o_ref):
    # lo/hi int32 and alpha/beta float32 live in SMEM; x/o tiles in VMEM.
    x = x_ref[...].astype(jnp.float32)
    lo = lo_ref[0]
    hi = hi_ref[0]
    alpha = alpha_ref[0]
    beta = beta_ref[0]
    # Grid only tiles dim 0 (rows); every tile carries the full class dim,
    # so tile-local column indices are already global column indices.
    col = jax.lax.broadcasted_iota(jnp.int32, x.shape, dimension=1)
    in_range = (col >= lo) & (col < hi)
    o_ref[...] = jnp.where(in_range, alpha * x + beta, x).astype(o_ref.dtype)


def bias_layer_forward(x, low_range, high_range, alpha, beta, *, block_rows=512):
    """Pallas equivalent of BiasLayer.forward(x, low_range, high_range)."""
    B, C = x.shape
    itemsize = jnp.dtype(x.dtype).itemsize

    # Row tiling: full batch when small (block == full dim needs no /8
    # divisibility), otherwise a multiple-of-8 row chunk capped so that the
    # double-buffered in+out tiles stay well under VMEM on every chip.
    if B <= block_rows:
        TB = B
    else:
        TB = block_rows
        per_buffer_budget = 8 * 1024 * 1024  # bytes; 4 buffers live -> <=32 MiB
        while TB > 8 and TB * C * itemsize > per_buffer_budget:
            TB //= 2
        TB = max(8, (TB // 8) * 8)

    grid = (pl.cdiv(B, TB),)

    lo = jnp.asarray([low_range], dtype=jnp.int32)
    hi = jnp.asarray([high_range], dtype=jnp.int32)
    alpha_arr = jnp.asarray(alpha, dtype=jnp.float32).reshape((1,))
    beta_arr = jnp.asarray(beta, dtype=jnp.float32).reshape((1,))

    smem_scalar = lambda: pl.BlockSpec((1,), lambda i: (0,), memory_space=pltpu.SMEM)

    return pl.pallas_call(
        _bias_layer_kernel,
        out_shape=jax.ShapeDtypeStruct((B, C), x.dtype),
        grid=grid,
        in_specs=[
            smem_scalar(),                              # low_range
            smem_scalar(),                              # high_range
            smem_scalar(),                              # alpha (float32)
            smem_scalar(),                              # beta  (float32)
            pl.BlockSpec((TB, C), lambda i: (i, 0)),    # x row tile, full class dim
        ],
        out_specs=pl.BlockSpec((TB, C), lambda i: (i, 0)),
        compiler_params=pltpu.CompilerParams(
            # Row tiles are independent -> shard across both TCs on v7x;
            # harmless no-op on single-TC v5e/v6e.
            dimension_semantics=("parallel",),
        ),
    )(lo, hi, alpha_arr, beta_arr, x)


def _reference(x, low_range, high_range, alpha, beta):
    seg = (jnp.float32(alpha) * x[:, low_range:high_range].astype(jnp.float32)
           + jnp.float32(beta)).astype(x.dtype)
    return x.at[:, low_range:high_range].set(seg)


if __name__ == "__main__":
    key = jax.random.PRNGKey(0)
    k1, k2, k3 = jax.random.split(key, 3)

    # BiasLayer params (alpha=ones(1), beta=zeros(1)) perturbed so the affine
    # path is actually exercised.
    alpha = 1.5
    beta = -0.25

    # Test 1: logits-like shape from the module's typical use (batch, classes).
    B1, C1 = 4, 20
    x1 = jax.random.normal(k1, (B1, C1), dtype=jnp.float32)
    lo1, hi1 = 8, 16
    out1 = jax.block_until_ready(bias_layer_forward(x1, lo1, hi1, alpha, beta))
    ref1 = _reference(x1, lo1, hi1, alpha, beta)
    assert out1.shape == x1.shape and out1.dtype == x1.dtype
    assert jnp.allclose(out1, ref1, atol=1e-6), "mismatch vs reference (test 1)"

    # Test 2: multi-row-tile (gridded) path, batch divisible by the tile.
    B2, C2 = 24, 20
    x2 = jax.random.normal(k2, (B2, C2), dtype=jnp.float32)
    lo2, hi2 = 0, 10
    out2 = jax.block_until_ready(
        bias_layer_forward(x2, lo2, hi2, alpha, beta, block_rows=8))
    ref2 = _reference(x2, lo2, hi2, alpha, beta)
    assert out2.shape == x2.shape and out2.dtype == x2.dtype
    assert jnp.allclose(out2, ref2, atol=1e-6), "mismatch vs reference (test 2)"

    # Test 3: partial last row tile (masked writeback path) + bf16 input.
    B3, C3 = 10, 20
    x3 = jax.random.normal(k3, (B3, C3), dtype=jnp.float32).astype(jnp.bfloat16)
    lo3, hi3 = 5, 17
    out3 = jax.block_until_ready(
        bias_layer_forward(x3, lo3, hi3, alpha, beta, block_rows=8))
    ref3 = _reference(x3, lo3, hi3, alpha, beta)
    assert out3.shape == x3.shape and out3.dtype == x3.dtype
    assert jnp.allclose(out3.astype(jnp.float32), ref3.astype(jnp.float32),
                        atol=2e-2), "mismatch vs reference (test 3)"

    print("KERNEL_OK")
</pallas_src>

<mosaic_0001>
module attributes {stable_mosaic.version = 11 : i64} {
  func.func @_bias_layer_kernel(%arg0: i32, %arg1: memref<1xi32, #tpu.memory_space<smem>>, %arg2: memref<1xi32, #tpu.memory_space<smem>>, %arg3: memref<1xf32, #tpu.memory_space<smem>>, %arg4: memref<1xf32, #tpu.memory_space<smem>>, %arg5: memref<4x20xf32, #tpu.memory_space<vmem>>, %arg6: memref<4x20xf32, #tpu.memory_space<vmem>>) attributes {dimension_semantics = [#tpu.dimension_semantics<parallel>], iteration_bounds = array<i64: 1>, scalar_prefetch = 0 : i64, scratch_operands = 0 : i64, tpu.core_type = #tpu.core_type<tc>, window_params = [{transform_indices = @transform_0, window_bounds = array<i64: 1>}, {transform_indices = @transform_1, window_bounds = array<i64: 1>}, {transform_indices = @transform_2, window_bounds = array<i64: 1>}, {transform_indices = @transform_3, window_bounds = array<i64: 1>}, {transform_indices = @transform_4, window_bounds = array<i64: 4, 20>}, {transform_indices = @transform_5, window_bounds = array<i64: 4, 20>}]} {
    %c0 = arith.constant 0 : index
    %c0_0 = arith.constant 0 : index
    %0 = vector.load %arg5[%c0, %c0_0] : memref<4x20xf32, #tpu.memory_space<vmem>>, vector<4x20xf32>
    %c0_1 = arith.constant 0 : index
    %1 = memref.load %arg1[%c0_1] : memref<1xi32, #tpu.memory_space<smem>>
    %c0_2 = arith.constant 0 : index
    %2 = memref.load %arg2[%c0_2] : memref<1xi32, #tpu.memory_space<smem>>
    %c0_3 = arith.constant 0 : index
    %3 = memref.load %arg3[%c0_3] : memref<1xf32, #tpu.memory_space<smem>>
    %c0_4 = arith.constant 0 : index
    %4 = memref.load %arg4[%c0_4] : memref<1xf32, #tpu.memory_space<smem>>
    %5 = tpu.iota {dimensions = array<i32: 1>} : vector<4x20xi32>
    %6 = vector.broadcast %1 : i32 to vector<4x20xi32>
    %7 = arith.cmpi sge, %5, %6 : vector<4x20xi32>
    %8 = vector.broadcast %2 : i32 to vector<4x20xi32>
    %9 = arith.cmpi slt, %5, %8 : vector<4x20xi32>
    %10 = arith.andi %7, %9 : vector<4x20xi1>
    %11 = vector.broadcast %3 : f32 to vector<4x20xf32>
    %12 = arith.mulf %11, %0 : vector<4x20xf32>
    %13 = vector.broadcast %4 : f32 to vector<4x20xf32>
    %14 = arith.addf %12, %13 : vector<4x20xf32>
    %15 = arith.select %10, %14, %0 : vector<4x20xi1>, vector<4x20xf32>
    %c0_5 = arith.constant 0 : index
    %c0_6 = arith.constant 0 : index
    %16 = vector.load %arg6[%c0_5, %c0_6] : memref<4x20xf32, #tpu.memory_space<vmem>>, vector<4x20xf32>
    tpu.vector_store %arg6[%c0_5, %c0_6], %15 {strides = array<i32>} : memref<4x20xf32, #tpu.memory_space<vmem>>, vector<4x20xf32>,
    return
  }
  func.func @transform_0(%arg0: i32) -> i32 {
    %c0_i32 = arith.constant 0 : i32
    %c0_i32_0 = arith.constant 0 : i32
    return %c0_i32 : i32
  }
  func.func @transform_1(%arg0: i32) -> i32 {
    %c0_i32 = arith.constant 0 : i32
    %c0_i32_0 = arith.constant 0 : i32
    return %c0_i32 : i32
  }
  func.func @transform_2(%arg0: i32) -> i32 {
    %c0_i32 = arith.constant 0 : i32
    %c0_i32_0 = arith.constant 0 : i32
    return %c0_i32 : i32
  }
  func.func @transform_3(%arg0: i32) -> i32 {
    %c0_i32 = arith.constant 0 : i32
    %c0_i32_0 = arith.constant 0 : i32
    return %c0_i32 : i32
  }
  func.func @transform_4(%arg0: i32) -> (i32, i32) {
    %c0_i32 = arith.constant 0 : i32
    %c0_i32_0 = arith.constant 0 : i32
    return %arg0, %c0_i32 : i32, i32
  }
  func.func @transform_5(%arg0: i32) -> (i32, i32) {
    %c0_i32 = arith.constant 0 : i32
    %c0_i32_0 = arith.constant 0 : i32
    return %arg0, %c0_i32 : i32, i32
  }
}

</mosaic_0001>

<llo_original>
// kernel: tpu_custom_call.1
$region0: #{tpu_custom_call.1}
  #allocation0 [shape = 'u32[]', space=smem, size = 0x4, offset = 0x4, fixed_abs, tag = 'smem constant byte address 0x4 - core index']
  #allocation1 [shape = 'u32[72,128]{1,0:T(1,128)}', space=vmem, size = 0x9000, scoped, tag = 'internal scratch']
  #allocation2 [shape = 's32[1]{0:T(128)S(6)}', space=smem, size = 0x200, scoped, tag = 'scoped memory for tpu_custom_call.1']
  #allocation3 [shape = 's32[1]{0:T(128)S(6)}', space=smem, size = 0x200, scoped, tag = 'scoped memory for tpu_custom_call.1']
  #allocation4 [shape = 'f32[1]{0:T(128)S(6)}', space=smem, size = 0x200, scoped, tag = 'scoped memory for tpu_custom_call.1']
  #allocation5 [shape = 'f32[1]{0:T(128)S(6)}', space=smem, size = 0x200, scoped, tag = 'scoped memory for tpu_custom_call.1']
  %s0 = inlined_call_operand.<no memory space> [shape: s32[1], index: 0, kind: input, shape index: {}]
  %s1 = inlined_call_operand.<no memory space> [shape: s32[1], index: 1, kind: input, shape index: {}]
  %s2 = inlined_call_operand.<no memory space> [shape: f32[1], index: 2, kind: input, shape index: {}]
  %s3 = inlined_call_operand.<no memory space> [shape: f32[1], index: 3, kind: input, shape index: {}]
  %s4 = inlined_call_operand.vmem [shape: f32[4,20], index: 4, kind: input, shape index: {}]
  %s5 = inlined_call_operand.hbm [shape: f32[4,20], index: 5, kind: output, shape index: {}]
  %s6 = sld [smem:[#allocation0]]
  $region30: #{tpu_custom_call.1} parent=0
    _
  %s8 = ssub.s32 1, %s6
  %s9 = scalar_select 0, %s8, %s6
  %10 = sst [smem:[#allocation2]] %s0
  %11 = sst [smem:[#allocation3]] %s1
  %12 = sst [smem:[#allocation4]] %s2
  %13 = sst [smem:[#allocation5]] %s3
  $region1: #{tpu_custom_call.1} parent=0
    #allocation6 [shape = 'u8[2048]{0}', space=vmem, size = 0x800, scoped, tag = 'output window, operand 0, single buffered']
    #allocation7 [shape = 's32[1]{0}', space=sflag, size = 0x4, scoped, tag = 'scoped memory for tpu_custom_call.1']
    %14 = vsyncpa [#allocation7], 0
    // Predicated region
    $region2: #{tpu_custom_call.1} parent=1 // pred_check
      _
    $region3: #{tpu_custom_call.1} parent=1 // pred_check_branch
      %16 = sbr.rel (0) target = $region5
    $region4: #{tpu_custom_call.1} parent=1 // pred_region
      _
    $region5: #{tpu_custom_call.1} parent=1 // pred_fallthru
      _
    // Predicated region
    $region6: #{tpu_custom_call.1} parent=1 // pred_check
      _
    $region7: #{tpu_custom_call.1} parent=1 // pred_check_branch
      %18 = sbr.rel (0) target = $region9
    $region8: #{tpu_custom_call.1} parent=1 // pred_region
      _
    $region9: #{tpu_custom_call.1} parent=1 // pred_fallthru
      _
    // Predicated region
    $region10: #{tpu_custom_call.1} parent=1 // pred_check
      _
    $region11: #{tpu_custom_call.1} parent=1 // pred_check_branch
      %20 = sbr.rel (0) target = $region13
    $region12: #{tpu_custom_call.1} parent=1 // pred_region
      _
    $region13: #{tpu_custom_call.1} parent=1 // pred_fallthru
      _
    // Predicated region
    $region14: #{tpu_custom_call.1} parent=1 // pred_check
      _
    $region15: #{tpu_custom_call.1} parent=1 // pred_check_branch
      %22 = sbr.rel (0) target = $region17
    $region16: #{tpu_custom_call.1} parent=1 // pred_region
      _
    $region17: #{tpu_custom_call.1} parent=1 // pred_fallthru
      _
    // Predicated region
    $region18: #{tpu_custom_call.1} parent=1 // pred_check
      _
    $region19: #{tpu_custom_call.1} parent=1 // pred_check_branch
      %24 = sbr.rel (0) target = $region21
    $region20: #{tpu_custom_call.1} parent=1 // pred_region
      _
    $region21: #{tpu_custom_call.1} parent=1 // pred_fallthru
      _
    %v25 = vld [vmem:[%s4] sm:$0xf]
    %s26 = sld [smem:[#allocation2]]
    %s27 = sld [smem:[#allocation3]]
    %s28 = sld [smem:[#allocation4]]
    %s29 = sld [smem:[#allocation5]]
    %v30 = vlaneseq
    %v31 = vand.u32 %v30, 127
    %v32 = vstv %s26
    %vm33 = vcmp.ge.s32.totalorder %v31, %v32
    %v34 = vstv %s27
    %vm35 = vcmp.lt.s32.totalorder %v31, %v34
    %vm36 = vmand %vm33, %vm35
    %v37 = vstv %s28
    %v38 = vmul.f32 %v37, %v25
    %v39 = vstv %s29
    %v40 = vadd.f32 %v38, %v39
    %v41 = vsel %vm36, %v40, %v25
    %vm42 = vcmask 158720
    %43 = vst.msk [vmem:[#allocation6] sm:$0xf] %vm42, %v41
    // Predicated region
    $region22: #{tpu_custom_call.1} parent=1 // pred_check
      _
    $region23: #{tpu_custom_call.1} parent=1 // pred_check_branch
      %45 = sbr.rel (0) target = $region25
    $region24: #{tpu_custom_call.1} parent=1 // pred_region
      %47 = vsyncadd [#allocation7], 0
      %s49 = sshll.u32 [#allocation6], 4
      %s50 = int_to_ptr.vmem [resolvable:$true] %s49
      %s51 = sshll.u32 %s5, 4
      %s52 = int_to_ptr.hbm [resolvable:$true] %s51
      %54 = dma.vmem_to_hbm [thread:$0]  %s50, 64, %s52, [#allocation7]
    $region25: #{tpu_custom_call.1} parent=1 // pred_fallthru
      _
    // Predicated region
    $region26: #{tpu_custom_call.1} parent=1 // pred_check
      _
    $region27: #{tpu_custom_call.1} parent=1 // pred_check_branch
      %56 = sbr.rel (0) target = $region29
    $region28: #{tpu_custom_call.1} parent=1 // pred_region
      %58 = dma.done [#allocation7], 64
    $region29: #{tpu_custom_call.1} parent=1 // pred_fallthru
      _
    %59 = vsyncpa [#allocation7], 1

</llo_original>
